<compile_context>
chip_gen: v7x
topology: tpu7x:2x2x1
jax: 0.10.0
libtpu: 0.0.40
codegen_flags: <defaults>
</compile_context>

<pallas_src>
import functools
import math

import jax
import jax.numpy as jnp
from jax.experimental import pallas as pl
from jax.experimental.pallas import tpu as pltpu


# ---------------------------------------------------------------------------
# Pallas kernel: one (plane-tile, crop) pair per grid step.
# ---------------------------------------------------------------------------
def _crop_resize_kernel(a_ref, bt_ref, x_ref, o_ref, y_ref):
    """a_ref : (1, OUT, H)       row-resize weights for this crop (compute dtype)
    bt_ref: (1, W, OUT)          col-resize weights, pre-transposed
    x_ref : (P_t*H, W)           P_t image planes stacked along rows (image dtype)
    o_ref : (1, OUT, P_t*OUT)    lane-dense output slab
    y_ref : (H, P_t*OUT)         VMEM scratch (column-resized planes, lanes=planes)
    """
    a = a_ref[0]                       # (OUT, H)
    bt = bt_ref[0]                     # (W, OUT)
    out_sz, h = a.shape
    p_t = x_ref.shape[0] // h

    # Big matmul #1: resize along W for all P_t planes at once.
    x = x_ref[...].astype(bt.dtype)                                # (P_t*H, W)
    y = jnp.dot(x, bt, preferred_element_type=jnp.float32)         # (P_t*H, OUT)
    y = y.astype(y_ref.dtype)

    # Relayout: planes move from rows into lanes via static, unrolled slab
    # copies through VMEM scratch, so the next matmul is one big lane-dense dot.
    for p in range(p_t):
        y_ref[:, p * out_sz:(p + 1) * out_sz] = y[p * h:(p + 1) * h, :]

    # Big matmul #2: resize along H for all P_t planes at once.
    z = jnp.dot(a, y_ref[...], preferred_element_type=jnp.float32)  # (OUT, P_t*OUT)
    o_ref[0] = z.astype(o_ref.dtype)


def _choose_plane_tile(n_planes, out_size, H, W, itemsize):
    """Biggest plane tile under a conservative VMEM budget; lane-dense when split."""
    budget = 8 << 20                                   # ~8 MiB per x buffer (x2 buffered)
    p_budget = max(1, budget // (H * W * itemsize))
    if n_planes <= p_budget:
        return n_planes                                # single tile: block == full extent
    # Multi-tile: need P_t*out_size % 128 == 0 and P_t*H % 8 == 0.
    p_sub = 8 // math.gcd(8, H)
    for lanes in (256, 128):                           # prefer 256 (v6e/v7x MXU width)
        p_align = math.lcm(lanes // math.gcd(lanes, out_size), p_sub)
        if p_align <= p_budget:
            return (p_budget // p_align) * p_align
    return math.lcm(128 // math.gcd(128, out_size), p_sub)


def _pallas_crop_resize(a_w, bt_w, x_planes, out_size, plane_tile):
    """a_w: (num_crop, OUT, H), bt_w: (num_crop, W, OUT), x_planes: (P, H, W)."""
    num_crop, _, H = a_w.shape
    W = bt_w.shape[1]
    n_planes = x_planes.shape[0]
    assert n_planes % plane_tile == 0
    n_tiles = n_planes // plane_tile
    x2d = x_planes.reshape(n_planes * H, W)

    # TODO(synk): a further win for large images is scalar-prefetching the crop
    # offsets and DMA'ing only an aligned crop window instead of full planes.
    grid_spec = pltpu.PrefetchScalarGridSpec(
        num_scalar_prefetch=0,
        grid=(n_tiles, num_crop),                     # planes outer, crops inner
        in_specs=[
            pl.BlockSpec((1, out_size, H), lambda t, c: (c, 0, 0)),
            pl.BlockSpec((1, W, out_size), lambda t, c: (c, 0, 0)),
            # x block index is constant across the inner crop axis -> fetched
            # once per plane tile and kept resident in VMEM for all crops.
            pl.BlockSpec((plane_tile * H, W), lambda t, c: (t, 0)),
        ],
        out_specs=pl.BlockSpec((1, out_size, plane_tile * out_size),
                               lambda t, c: (c, 0, t)),
        scratch_shapes=[pltpu.VMEM((H, plane_tile * out_size), a_w.dtype)],
    )
    return pl.pallas_call(
        _crop_resize_kernel,
        out_shape=jax.ShapeDtypeStruct(
            (num_crop, out_size, n_planes * out_size), x_planes.dtype),
        grid_spec=grid_spec,
        compiler_params=pltpu.CompilerParams(
            dimension_semantics=("parallel", "arbitrary")),
    )(a_w, bt_w, x2d)


# ---------------------------------------------------------------------------
# Glue: random crop parameters + antialiased bilinear weight matrices.
# ---------------------------------------------------------------------------
def _sample_crop_params(key, H, W, num_crop, scale=(0.08, 1.0)):
    # RandomResizedCrop.get_params with ratio=(1,1): square crops.
    # TODO(synk): torch uses Python/torch RNG + 10-attempt fallback; replaced
    # with jax.random (deterministic) and a clip to min(H, W).
    k_area, k_i, k_j = jax.random.split(key, 3)
    area = (H * W) * jax.random.uniform(
        k_area, (num_crop,), minval=scale[0], maxval=scale[1])
    side = jnp.clip(jnp.round(jnp.sqrt(area)), 1, min(H, W)).astype(jnp.int32)
    u_i = jax.random.uniform(k_i, (num_crop,))
    u_j = jax.random.uniform(k_j, (num_crop,))
    top = jnp.floor(u_i * (H - side + 1).astype(jnp.float32)).astype(jnp.int32)
    left = jnp.floor(u_j * (W - side + 1).astype(jnp.float32)).astype(jnp.int32)
    return top, left, side


def _resize_weights(offset, length, in_size, out_size):
    """(out_size, in_size) antialiased bilinear weights for resizing the
    window [offset, offset+length) of a length-`in_size` axis to `out_size`.
    TODO(synk): out-of-window taps are zeroed + renormalized, whereas PIL/torch
    clamp to the window edge; border pixels can differ slightly."""
    length_f = length.astype(jnp.float32)
    scale = length_f / float(out_size)
    support = jnp.maximum(scale, 1.0)  # triangle-filter support (antialias)
    centers = (jnp.arange(out_size, dtype=jnp.float32) + 0.5) * scale  # crop coords
    src = jnp.arange(in_size, dtype=jnp.float32)
    crop_pos = src[None, :] - offset.astype(jnp.float32) + 0.5
    t = (crop_pos - centers[:, None]) / support
    w = jnp.maximum(0.0, 1.0 - jnp.abs(t))
    in_bounds = (src[None, :] >= offset) & (src[None, :] < offset + length)
    w = w * in_bounds.astype(jnp.float32)
    w = w / jnp.maximum(jnp.sum(w, axis=-1, keepdims=True), 1e-12)
    return w


# ---------------------------------------------------------------------------
# MultiRandomCrop forward.
# ---------------------------------------------------------------------------
@functools.partial(
    jax.jit,
    static_argnames=("num_crop", "size", "factor", "stack_dim", "compute_dtype"))
def multi_random_crop(image, key, *, num_crop=5, size=16, factor=2, stack_dim=0,
                      compute_dtype=jnp.bfloat16):
    """image: (N, C, H, W). Returns (num_crop, N, C, size//factor, size//factor).

    Matmul operands run in `compute_dtype` (bf16 by default, f32 accumulation);
    results match an f32 reference to ~1e-2 relative."""
    assert stack_dim == 0, "only stack_dim=0 is implemented"
    N, C, H, W = image.shape
    out_size = size // factor

    top, left, side = _sample_crop_params(key, H, W, num_crop)
    a_w = jax.vmap(lambda o, l: _resize_weights(o, l, H, out_size))(top, side)
    b_w = jax.vmap(lambda o, l: _resize_weights(o, l, W, out_size))(left, side)
    a_w = a_w.astype(compute_dtype)                            # (num_crop, OUT, H)
    bt_w = jnp.swapaxes(b_w, -1, -2).astype(compute_dtype)     # (num_crop, W, OUT)

    P = N * C
    x_planes = image.reshape(P, H, W)
    p_t = _choose_plane_tile(P, out_size, H, W, image.dtype.itemsize)
    P_pad = -(-P // p_t) * p_t
    if P_pad != P:
        x_planes = jnp.pad(x_planes, ((0, P_pad - P), (0, 0), (0, 0)))

    out = _pallas_crop_resize(a_w, bt_w, x_planes, out_size, p_t)
    # (num_crop, OUT, P_pad*OUT) -> (num_crop, N, C, OUT, OUT)
    out = out.reshape(num_crop, out_size, P_pad, out_size)[:, :, :P, :]
    out = jnp.transpose(out, (0, 2, 1, 3))
    return out.reshape(num_crop, N, C, out_size, out_size)


if __name__ == "__main__":
    key = jax.random.PRNGKey(0)
    k_img, k_crop = jax.random.split(key)
    # Small shapes consistent with the module: batch=2, channels=4, spatial=16,
    # size=16, factor=2 -> 8x8 crops, num_crop=5.
    x = jax.random.normal(k_img, (2, 4, 16, 16), dtype=jnp.float32)
    out = multi_random_crop(x, k_crop, num_crop=5, size=16, factor=2, stack_dim=0)
    out = jax.block_until_ready(out)
    assert out.shape == (5, 2, 4, 8, 8), out.shape
    assert out.dtype == jnp.float32
    print("KERNEL_OK")
</pallas_src>

<mosaic_0001>
module attributes {stable_mosaic.version = 11 : i64} {
  func.func @_crop_resize_kernel(%arg0: i32, %arg1: i32, %arg2: memref<1x8x16xbf16, #tpu.memory_space<vmem>>, %arg3: memref<1x16x8xbf16, #tpu.memory_space<vmem>>, %arg4: memref<128x16xf32, #tpu.memory_space<vmem>>, %arg5: memref<1x8x64xf32, #tpu.memory_space<vmem>>, %arg6: memref<16x64xbf16, #tpu.memory_space<vmem>>) attributes {dimension_semantics = [#tpu.dimension_semantics<parallel>, #tpu.dimension_semantics<arbitrary>], iteration_bounds = array<i64: 1, 5>, scalar_prefetch = 0 : i64, scratch_operands = 1 : i64, tpu.core_type = #tpu.core_type<tc>, window_params = [{transform_indices = @transform_0, window_bounds = array<i64: 1, 8, 16>}, {transform_indices = @transform_1, window_bounds = array<i64: 1, 16, 8>}, {transform_indices = @transform_2, window_bounds = array<i64: 128, 16>}, {transform_indices = @transform_3, window_bounds = array<i64: 1, 8, 64>}]} {
    %c0 = arith.constant 0 : index
    %c0_0 = arith.constant 0 : index
    %c0_1 = arith.constant 0 : index
    %0 = vector.load %arg2[%c0, %c0_0, %c0_1] : memref<1x8x16xbf16, #tpu.memory_space<vmem>>, vector<1x8x16xbf16>
    %1 = vector.shape_cast %0 : vector<1x8x16xbf16> to vector<8x16xbf16>
    %c0_2 = arith.constant 0 : index
    %c0_3 = arith.constant 0 : index
    %c0_4 = arith.constant 0 : index
    %2 = vector.load %arg3[%c0_2, %c0_3, %c0_4] : memref<1x16x8xbf16, #tpu.memory_space<vmem>>, vector<1x16x8xbf16>
    %3 = vector.shape_cast %2 : vector<1x16x8xbf16> to vector<16x8xbf16>
    %c0_5 = arith.constant 0 : index
    %c0_6 = arith.constant 0 : index
    %4 = vector.load %arg4[%c0_5, %c0_6] : memref<128x16xf32, #tpu.memory_space<vmem>>, vector<128x16xf32>
    %5 = arith.truncf %4 : vector<128x16xf32> to vector<128x16xbf16>
    %cst = arith.constant dense<0.000000e+00> : vector<128x8xf32>
    %6 = tpu.matmul %5, %3, %cst {dimension_numbers = #tpu.dot_dimension_numbers<[1], [0], [0], [1], [0, 0, 1, 1], [], []>} : vector<128x16xbf16>, vector<16x8xbf16>, vector<128x8xf32> -> vector<128x8xf32>
    %7 = arith.truncf %6 : vector<128x8xf32> to vector<128x8xbf16>
    %8 = vector.extract_strided_slice %7 {offsets = [0, 0], sizes = [16, 8], strides = [1, 1]} : vector<128x8xbf16> to vector<16x8xbf16>
    %c0_7 = arith.constant 0 : index
    %c0_8 = arith.constant 0 : index
    %9 = vector.load %arg6[%c0_7, %c0_8] : memref<16x64xbf16, #tpu.memory_space<vmem>>, vector<16x8xbf16>
    tpu.vector_store %arg6[%c0_7, %c0_8], %8 {strides = array<i32>} : memref<16x64xbf16, #tpu.memory_space<vmem>>, vector<16x8xbf16>,
    %10 = vector.extract_strided_slice %7 {offsets = [16, 0], sizes = [16, 8], strides = [1, 1]} : vector<128x8xbf16> to vector<16x8xbf16>
    %c0_9 = arith.constant 0 : index
    %c8 = arith.constant 8 : index
    %11 = vector.load %arg6[%c0_9, %c8] : memref<16x64xbf16, #tpu.memory_space<vmem>>, vector<16x8xbf16>
    tpu.vector_store %arg6[%c0_9, %c8], %10 {strides = array<i32>} : memref<16x64xbf16, #tpu.memory_space<vmem>>, vector<16x8xbf16>,
    %12 = vector.extract_strided_slice %7 {offsets = [32, 0], sizes = [16, 8], strides = [1, 1]} : vector<128x8xbf16> to vector<16x8xbf16>
    %c0_10 = arith.constant 0 : index
    %c16 = arith.constant 16 : index
    %13 = vector.load %arg6[%c0_10, %c16] : memref<16x64xbf16, #tpu.memory_space<vmem>>, vector<16x8xbf16>
    tpu.vector_store %arg6[%c0_10, %c16], %12 {strides = array<i32>} : memref<16x64xbf16, #tpu.memory_space<vmem>>, vector<16x8xbf16>,
    %14 = vector.extract_strided_slice %7 {offsets = [48, 0], sizes = [16, 8], strides = [1, 1]} : vector<128x8xbf16> to vector<16x8xbf16>
    %c0_11 = arith.constant 0 : index
    %c24 = arith.constant 24 : index
    %15 = vector.load %arg6[%c0_11, %c24] : memref<16x64xbf16, #tpu.memory_space<vmem>>, vector<16x8xbf16>
    tpu.vector_store %arg6[%c0_11, %c24], %14 {strides = array<i32>} : memref<16x64xbf16, #tpu.memory_space<vmem>>, vector<16x8xbf16>,
    %16 = vector.extract_strided_slice %7 {offsets = [64, 0], sizes = [16, 8], strides = [1, 1]} : vector<128x8xbf16> to vector<16x8xbf16>
    %c0_12 = arith.constant 0 : index
    %c32 = arith.constant 32 : index
    %17 = vector.load %arg6[%c0_12, %c32] : memref<16x64xbf16, #tpu.memory_space<vmem>>, vector<16x8xbf16>
    tpu.vector_store %arg6[%c0_12, %c32], %16 {strides = array<i32>} : memref<16x64xbf16, #tpu.memory_space<vmem>>, vector<16x8xbf16>,
    %18 = vector.extract_strided_slice %7 {offsets = [80, 0], sizes = [16, 8], strides = [1, 1]} : vector<128x8xbf16> to vector<16x8xbf16>
    %c0_13 = arith.constant 0 : index
    %c40 = arith.constant 40 : index
    %19 = vector.load %arg6[%c0_13, %c40] : memref<16x64xbf16, #tpu.memory_space<vmem>>, vector<16x8xbf16>
    tpu.vector_store %arg6[%c0_13, %c40], %18 {strides = array<i32>} : memref<16x64xbf16, #tpu.memory_space<vmem>>, vector<16x8xbf16>,
    %20 = vector.extract_strided_slice %7 {offsets = [96, 0], sizes = [16, 8], strides = [1, 1]} : vector<128x8xbf16> to vector<16x8xbf16>
    %c0_14 = arith.constant 0 : index
    %c48 = arith.constant 48 : index
    %21 = vector.load %arg6[%c0_14, %c48] : memref<16x64xbf16, #tpu.memory_space<vmem>>, vector<16x8xbf16>
    tpu.vector_store %arg6[%c0_14, %c48], %20 {strides = array<i32>} : memref<16x64xbf16, #tpu.memory_space<vmem>>, vector<16x8xbf16>,
    %22 = vector.extract_strided_slice %7 {offsets = [112, 0], sizes = [16, 8], strides = [1, 1]} : vector<128x8xbf16> to vector<16x8xbf16>
    %c0_15 = arith.constant 0 : index
    %c56 = arith.constant 56 : index
    %23 = vector.load %arg6[%c0_15, %c56] : memref<16x64xbf16, #tpu.memory_space<vmem>>, vector<16x8xbf16>
    tpu.vector_store %arg6[%c0_15, %c56], %22 {strides = array<i32>} : memref<16x64xbf16, #tpu.memory_space<vmem>>, vector<16x8xbf16>,
    %c0_16 = arith.constant 0 : index
    %c0_17 = arith.constant 0 : index
    %24 = vector.load %arg6[%c0_16, %c0_17] : memref<16x64xbf16, #tpu.memory_space<vmem>>, vector<16x64xbf16>
    %cst_18 = arith.constant dense<0.000000e+00> : vector<8x64xf32>
    %25 = tpu.matmul %1, %24, %cst_18 {dimension_numbers = #tpu.dot_dimension_numbers<[1], [0], [0], [1], [0, 0, 1, 1], [], []>} : vector<8x16xbf16>, vector<16x64xbf16>, vector<8x64xf32> -> vector<8x64xf32>
    %c0_19 = arith.constant 0 : index
    %c0_20 = arith.constant 0 : index
    %c0_21 = arith.constant 0 : index
    %26 = vector.load %arg5[%c0_19, %c0_20, %c0_21] : memref<1x8x64xf32, #tpu.memory_space<vmem>>, vector<1x8x64xf32>
    %27 = vector.shape_cast %26 : vector<1x8x64xf32> to vector<8x64xf32>
    %28 = vector.shape_cast %25 : vector<8x64xf32> to vector<1x8x64xf32>
    tpu.vector_store %arg5[%c0_19, %c0_20, %c0_21], %28 {strides = array<i32>} : memref<1x8x64xf32, #tpu.memory_space<vmem>>, vector<1x8x64xf32>,
    return
  }
  func.func @transform_0(%arg0: i32, %arg1: i32) -> (i32, i32, i32) {
    %c0_i32 = arith.constant 0 : i32
    %c0_i32_0 = arith.constant 0 : i32
    %c0_i32_1 = arith.constant 0 : i32
    return %arg1, %c0_i32, %c0_i32_0 : i32, i32, i32
  }
  func.func @transform_1(%arg0: i32, %arg1: i32) -> (i32, i32, i32) {
    %c0_i32 = arith.constant 0 : i32
    %c0_i32_0 = arith.constant 0 : i32
    %c0_i32_1 = arith.constant 0 : i32
    return %arg1, %c0_i32, %c0_i32_0 : i32, i32, i32
  }
  func.func @transform_2(%arg0: i32, %arg1: i32) -> (i32, i32) {
    %c0_i32 = arith.constant 0 : i32
    %c0_i32_0 = arith.constant 0 : i32
    return %arg0, %c0_i32 : i32, i32
  }
  func.func @transform_3(%arg0: i32, %arg1: i32) -> (i32, i32, i32) {
    %c0_i32 = arith.constant 0 : i32
    %c0_i32_0 = arith.constant 0 : i32
    return %arg1, %c0_i32, %arg0 : i32, i32, i32
  }
}

</mosaic_0001>

<llo_original>
// kernel: multi_random_crop.1
$region0: #{multi_random_crop.1}
  #allocation0 [shape = 'u32[]', space=smem, size = 0x4, offset = 0x4, fixed_abs, tag = 'smem constant byte address 0x4 - core index']
  #allocation1 [shape = 'u32[144,128]{1,0:T(1,128)}', space=vmem, size = 0x12000, scoped, tag = 'internal scratch']
  #allocation2 [shape = 'bf16[16,64]{1,0:T(16,128)(2,1)}', space=vmem, size = 0x1000, scoped, tag = 'scratch operand']
  %s0 = inlined_call_operand.vmem [shape: bf16[5,8,16], index: 0, kind: input, shape index: {}]
  %s1 = inlined_call_operand.vmem [shape: bf16[5,16,8], index: 1, kind: input, shape index: {}]
  %s2 = inlined_call_operand.vmem [shape: f32[128,16], index: 2, kind: input, shape index: {}]
  %s3 = inlined_call_operand.vmem [shape: f32[5,8,64], index: 3, kind: output, shape index: {}]
  %s4 = sld [smem:[#allocation0]]
  $region45: #{multi_random_crop.1} parent=0
    _
  %s6 = ssub.s32 1, %s4
  %s7 = scalar_select 0, %s6, %s4
  loop: start=0, step=1, limit=7
  $region2: #{multi_random_crop.1} parent=0 // loop_pre_header
    _
  $region3: #{multi_random_crop.1} parent=0 // loop_header
    %s9 = sphi 0, %s13
    %p10 = scmp.ge.s32.totalorder %s9, 7
    %s16 = sphi 0, %s28
    %s17 = sphi 0, %s24
    %s18 = sphi 0, %s16
    %s19 = sphi 0, %s17
    %s20 = sphi 0, %s18
    %s21 = sphi 0, %s19
    %s31 = sphi 0, %s33
    %s34 = sphi 0, %s31
    %s35 = sphi 0, %s34
    %s51 = sphi 0, %s35
    %s57 = sphi 0, %s59
    %s60 = sphi 0, %s57
    %s61 = sphi 0, %s60
    %s77 = sphi 0, %s61
    %s83 = sphi 0, %s85
    %s86 = sphi 0, %s83
    %s87 = sphi 0, %s86
    %s103 = sphi 0, %s87
    %s111 = sphi 0, %s113
    %s114 = sphi 0, %s111
    %s115 = sphi 0, %s114
    %s131 = sphi 0, %s115
  $region4: #{multi_random_crop.1} parent=0 // loop_header_branch
    %12 = sbr.rel (%p10) target = $region8
  $region5: #{multi_random_crop.1} parent=0 // loop_body
    %s14 = ssub.s32 %s9, 1
    %s15 = ssub.s32 %s9, 2
    %s22 = sadd.s32 1, %s17
    %p23 = scmp.ge.s32.totalorder %s22, 5
    %s24 = scalar_select %p23, 0, %s22
    %s25 = sadd.s32 1, %s16
    %s26 = scalar_select %p23, %s25, %s16
    %p27 = scmp.ge.s32.totalorder %s26, 1
    %s28 = scalar_select %p27, 0, %s26
    %s29 = ssub.s32 %s17, %s24
    %p30 = scmp.eq.s32.totalorder %s29, 0
    %s32 = sadd.s32 %s31, 1
    %s33 = scalar_select %p30, %s31, %s32
    %p36 = pneg %p30
    %p37 = scmp.eq.s32.totalorder %s9, 4
    %p38 = por %p36, %p37
    %p39 = scmp.ne.s32.totalorder %s31, %s34
    %p40 = scmp.eq.s32.totalorder %s9, 0
    %p41 = por %p39, %p40
    %p42 = scmp.ne.s32.totalorder %s31, %s34
    %p43 = scmp.eq.s32.totalorder %s14, 4
    %p44 = por %p42, %p43
    %p45 = scmp.ne.s32.totalorder %s34, %s35
    %p46 = scmp.eq.s32.totalorder %s14, 0
    %p47 = por %p45, %p46
    %p48 = scmp.ne.s32.totalorder %s34, %s35
    %p49 = scmp.eq.s32.totalorder %s15, 4
    %p50 = por %p48, %p49
    %p52 = scmp.ne.s32.totalorder %s35, %s51
    %p53 = scmp.eq.s32.totalorder %s15, 0
    %p54 = por %p52, %p53
    %s55 = ssub.s32 %s17, %s24
    %p56 = scmp.eq.s32.totalorder %s55, 0
    %s58 = sadd.s32 %s57, 1
    %s59 = scalar_select %p56, %s57, %s58
    %p62 = pneg %p56
    %p63 = scmp.eq.s32.totalorder %s9, 4
    %p64 = por %p62, %p63
    %p65 = scmp.ne.s32.totalorder %s57, %s60
    %p66 = scmp.eq.s32.totalorder %s9, 0
    %p67 = por %p65, %p66
    %p68 = scmp.ne.s32.totalorder %s57, %s60
    %p69 = scmp.eq.s32.totalorder %s14, 4
    %p70 = por %p68, %p69
    %p71 = scmp.ne.s32.totalorder %s60, %s61
    %p72 = scmp.eq.s32.totalorder %s14, 0
    %p73 = por %p71, %p72
    %p74 = scmp.ne.s32.totalorder %s60, %s61
    %p75 = scmp.eq.s32.totalorder %s15, 4
    %p76 = por %p74, %p75
    %p78 = scmp.ne.s32.totalorder %s61, %s77
    %p79 = scmp.eq.s32.totalorder %s15, 0
    %p80 = por %p78, %p79
    %s81 = ssub.s32 %s16, %s28
    %p82 = scmp.eq.s32.totalorder %s81, 0
    %s84 = sadd.s32 %s83, 1
    %s85 = scalar_select %p82, %s83, %s84
    %p88 = pneg %p82
    %p89 = scmp.eq.s32.totalorder %s9, 4
    %p90 = por %p88, %p89
    %p91 = scmp.ne.s32.totalorder %s83, %s86
    %p92 = scmp.eq.s32.totalorder %s9, 0
    %p93 = por %p91, %p92
    %p94 = scmp.ne.s32.totalorder %s83, %s86
    %p95 = scmp.eq.s32.totalorder %s14, 4
    %p96 = por %p94, %p95
    %p97 = scmp.ne.s32.totalorder %s86, %s87
    %p98 = scmp.eq.s32.totalorder %s14, 0
    %p99 = por %p97, %p98
    %p100 = scmp.ne.s32.totalorder %s86, %s87
    %p101 = scmp.eq.s32.totalorder %s15, 4
    %p102 = por %p100, %p101
    %p104 = scmp.ne.s32.totalorder %s87, %s103
    %p105 = scmp.eq.s32.totalorder %s15, 0
    %p106 = por %p104, %p105
    %s107 = ssub.s32 %s17, %s24
    %s108 = ssub.s32 %s16, %s28
    %s109 = sor.u32 %s107, %s108
    %p110 = scmp.eq.s32.totalorder %s109, 0
    %s112 = sadd.s32 %s111, 1
    %s113 = scalar_select %p110, %s111, %s112
    %p116 = pneg %p110
    %p117 = scmp.eq.s32.totalorder %s9, 4
    %p118 = por %p116, %p117
    %p119 = scmp.ne.s32.totalorder %s111, %s114
    %p120 = scmp.eq.s32.totalorder %s9, 0
    %p121 = por %p119, %p120
    %p122 = scmp.ne.s32.totalorder %s111, %s114
    %p123 = scmp.eq.s32.totalorder %s14, 4
    %p124 = por %p122, %p123
    %p125 = scmp.ne.s32.totalorder %s114, %s115
    %p126 = scmp.eq.s32.totalorder %s14, 0
    %p127 = por %p125, %p126
    %p128 = scmp.ne.s32.totalorder %s114, %s115
    %p129 = scmp.eq.s32.totalorder %s15, 4
    %p130 = por %p128, %p129
    %p132 = scmp.ne.s32.totalorder %s115, %s131
    %p133 = scmp.eq.s32.totalorder %s15, 0
    %p134 = por %p132, %p133
    %p135 = scmp.le.s32.totalorder 1, %s9
    %p136 = scmp.lt.s32.totalorder %s9, 6
    %p137 = pnand %p135, %p136
    %p138 = pneg %p137
    // Predicated region
    $region9: #{multi_random_crop.1} parent=5 // pred_check
      _
    $region10: #{multi_random_crop.1} parent=5 // pred_check_branch
      %140 = sbr.rel (%p137) target = $region12
    $region11: #{multi_random_crop.1} parent=5 // pred_region
      %s141 = ssub.s32 %s9, 1
      // Predicated region
      $region13: #{multi_random_crop.1} parent=11 // pred_check
        %p142 = pneg %p99
      $region14: #{multi_random_crop.1} parent=11 // pred_check_branch
        %144 = sbr.rel (%p142) target = $region16
      $region15: #{multi_random_crop.1} parent=11 // pred_region
        %s145 = smul.u32 16, %s18
        %p146 = scmp.lt.s32.totalorder %s145, 15
        %s147 = scalar_select %p146, %s145, 15
        %s148 = smul.addr %s147, 8
        %s149 = scalar_lea.vmem %s2, %s148
        %s150 = smul.u32 16, %s18
      $region16: #{multi_random_crop.1} parent=11 // pred_fallthru
        _
    $region12: #{multi_random_crop.1} parent=5 // pred_fallthru
      _
    %p151 = scmp.lt.s32.totalorder %s9, 5
    // Predicated region
    $region17: #{multi_random_crop.1} parent=5 // pred_check
      %p152 = pneg %p151
    $region18: #{multi_random_crop.1} parent=5 // pred_check_branch
      %154 = sbr.rel (%p152) target = $region20
    $region19: #{multi_random_crop.1} parent=5 // pred_region
      // Predicated region
      $region21: #{multi_random_crop.1} parent=19 // pred_check
        %p155 = pneg %p41
      $region22: #{multi_random_crop.1} parent=19 // pred_check_branch
        %157 = sbr.rel (%p155) target = $region24
      $region23: #{multi_random_crop.1} parent=19 // pred_region
        %p158 = scmp.lt.s32.totalorder %s17, 4
        %s159 = scalar_select %p158, %s17, 4
        %s160 = smul.addr %s159, 4
        %s161 = scalar_lea.vmem %s0, %s160
      $region24: #{multi_random_crop.1} parent=19 // pred_fallthru
        _
      // Predicated region
      $region25: #{multi_random_crop.1} parent=19 // pred_check
        %p162 = pneg %p67
      $region26: #{multi_random_crop.1} parent=19 // pred_check_branch
        %164 = sbr.rel (%p162) target = $region28
      $region27: #{multi_random_crop.1} parent=19 // pred_region
        %p165 = scmp.lt.s32.totalorder %s17, 4
        %s166 = scalar_select %p165, %s17, 4
        %s167 = smul.addr %s166, 2
        %s168 = smul.addr %s167, 4
        %s169 = scalar_lea.vmem %s1, %s168
      $region28: #{multi_random_crop.1} parent=19 // pred_fallthru
        _
    $region20: #{multi_random_crop.1} parent=5 // pred_fallthru
      _
    %p170 = scmp.le.s32.totalorder 1, %s9
    %p171 = scmp.lt.s32.totalorder %s9, 6
    %p172 = pnand %p170, %p171
    %p173 = pneg %p172
    // Predicated region
    $region29: #{multi_random_crop.1} parent=5 // pred_check
      _
    $region30: #{multi_random_crop.1} parent=5 // pred_check_branch
      %175 = sbr.rel (%p172) target = $region32
    $region31: #{multi_random_crop.1} parent=5 // pred_region
      %s176 = ssub.s32 %s9, 1
      %p177 = scmp.lt.s32.totalorder %s19, 4
      %s178 = scalar_select %p177, %s19, 4
      %s179 = smul.addr %s178, 4
      %s180 = scalar_lea.vmem %s0, %s179
      %p181 = pneg %p47
      %p182 = pneg %p44
      %p183 = scmp.lt.s32.totalorder %s19, 4
      %s184 = scalar_select %p183, %s19, 4
      %s185 = smul.addr %s184, 2
      %s186 = smul.addr %s185, 4
      %s187 = scalar_lea.vmem %s1, %s186
      %p188 = pneg %p73
      %p189 = pneg %p70
      %s190 = smul.u32 16, %s18
      %p191 = scmp.lt.s32.totalorder %s190, 15
      %s192 = scalar_select %p191, %s190, 15
      %s193 = smul.addr %s192, 8
      %s194 = scalar_lea.vmem %s2, %s193
      %p195 = pneg %p99
      %p196 = pneg %p96
      %p197 = pneg %p127
      %p198 = pneg %p124
      %p199 = scmp.lt.s32.totalorder %s19, 4
      %s200 = scalar_select %p199, %s19, 4
      %p201 = scmp.lt.s32.totalorder %s18, 0
      %s202 = scalar_select %p201, %s18, 0
      %s203 = sadd.s32 %s202, %s200
      %s204 = smul.addr %s203, 8
      %s205 = scalar_lea.vmem %s3, %s204
      %p206 = scmp.lt.s32.totalorder %s19, 4
      %s207 = scalar_select %p206, %s19, 4
      %s208 = smul.addr %s207, 4
      %s209 = scalar_lea.vmem %s0, %s208
      %p210 = scmp.lt.s32.totalorder %s19, 4
      %s211 = scalar_select %p210, %s19, 4
      %s212 = smul.addr %s211, 2
      %s213 = smul.addr %s212, 4
      %s214 = scalar_lea.vmem %s1, %s213
      %s215 = smul.u32 16, %s18
      %p216 = scmp.lt.s32.totalorder %s215, 15
      %s217 = scalar_select %p216, %s215, 15
      %s218 = smul.addr %s217, 8
      %s219 = scalar_lea.vmem %s2, %s218
      %s220 = smul.u32 16, %s18
      %p221 = scmp.lt.s32.totalorder %s19, 4
      %s222 = scalar_select %p221, %s19, 4
      %p223 = scmp.lt.s32.totalorder %s18, 0
      %s224 = scalar_select %p223, %s18, 0
      %s225 = sadd.s32 %s224, %s222
      %s226 = smul.addr %s225, 8
      %s227 = scalar_lea.vmem %s3, %s226
      %v229 = vld [vmem:[%s209] sm:$0xf]
      %v230 = vld [vmem:[%s214] sm:$0xf]
      %v231 = vld [vmem:[%s214 + $0x4] sm:$0xf]
      %v232 = vld [vmem:[%s219] sm:$0xff]
      %v233 = vld [vmem:[%s219 + $0x8] sm:$0xff]
      %v234 = vld [vmem:[%s219 + $0x10] sm:$0xff]
      %v235 = vld [vmem:[%s219 + $0x18] sm:$0xff]
      %v236 = vld [vmem:[%s219 + $0x20] sm:$0xff]
      %v237 = vld [vmem:[%s219 + $0x28] sm:$0xff]
      %v238 = vld [vmem:[%s219 + $0x30] sm:$0xff]
      %v239 = vld [vmem:[%s219 + $0x38] sm:$0xff]
      %v240 = vld [vmem:[%s219 + $0x40] sm:$0xff]
      %v241 = vld [vmem:[%s219 + $0x48] sm:$0xff]
      %v242 = vld [vmem:[%s219 + $0x50] sm:$0xff]
      %v243 = vld [vmem:[%s219 + $0x58] sm:$0xff]
      %v244 = vld [vmem:[%s219 + $0x60] sm:$0xff]
      %v245 = vld [vmem:[%s219 + $0x68] sm:$0xff]
      %v246 = vld [vmem:[%s219 + $0x70] sm:$0xff]
      %v247 = vld [vmem:[%s219 + $0x78] sm:$0xff]
      %v248 = vpack.c.bf16 %v233, %v232
      %v249 = vpack.c.bf16 %v235, %v234
      %v250 = vpack.c.bf16 %v237, %v236
      %v251 = vpack.c.bf16 %v239, %v238
      %v252 = vpack.c.bf16 %v241, %v240
      %v253 = vpack.c.bf16 %v243, %v242
      %v254 = vpack.c.bf16 %v245, %v244
      %v255 = vpack.c.bf16 %v247, %v246
      %v258 = vunpack.c.l.b16 %v230
      %v259 = vunpack.c.l.b16 %v231
      %v260 = vpack.c.b16 %v259, %v258
      %vm262 = vcmask 130048
      %v264 = vsel %vm262, %v248, 0
      %v267 = vsel %vm262, %v249, 0
      %v270 = vsel %vm262, %v250, 0
      %v273 = vsel %vm262, %v251, 0
      %v276 = vsel %vm262, %v252, 0
      %v279 = vsel %vm262, %v253, 0
      %v282 = vsel %vm262, %v254, 0
      %v285 = vsel %vm262, %v255, 0
      %287 = vmatprep.subr.bf16.mxu0 0
      %288 = vmatpush1.bf16.msra.mxu0 %v260
      %289 = vmatprep.subr.bf16.mxu0 0
      %290 = vmatpush1.bf16.msra.mxu0 0
      %291 = vmatprep.subr.bf16.mxu0 0
      %292 = vmatpush1.bf16.msra.mxu0 0
      %293 = vmatprep.subr.bf16.mxu0 0
      %294 = vmatpush1.bf16.msra.mxu0 0
      %295 = vmatprep.subr.bf16.mxu0 0
      %296 = vmatpush1.bf16.msra.mxu0 0
      %297 = vmatprep.subr.bf16.mxu0 0
      %298 = vmatpush1.bf16.msra.mxu0 0
      %299 = vmatprep.subr.bf16.mxu0 0
      %300 = vmatpush1.bf16.msra.mxu0 0
      %301 = vmatprep.subr.bf16.mxu0 0
      %302 = vmatpush1.bf16.msra.mxu0 0
      %303 = vmatprep.subr.bf16.mxu0 0
      %304 = vmatpush1.bf16.msra.mxu0 0
      %305 = vmatprep.subr.bf16.mxu0 0
      %306 = vmatpush1.bf16.msra.mxu0 0
      %307 = vmatprep.subr.bf16.mxu0 0
      %308 = vmatpush1.bf16.msra.mxu0 0
      %309 = vmatprep.subr.bf16.mxu0 0
      %310 = vmatpush1.bf16.msra.mxu0 0
      %311 = vmatprep.subr.bf16.mxu0 0
      %312 = vmatpush1.bf16.msra.mxu0 0
      %313 = vmatprep.subr.bf16.mxu0 0
      %314 = vmatpush1.bf16.msra.mxu0 0
      %315 = vmatprep.subr.bf16.mxu0 0
      %316 = vmatpush1.bf16.msra.mxu0 0
      %317 = vmatprep.subr.bf16.mxu0 0
      %318 = vmatpush1.bf16.msra.mxu0 0
      %319 = vmatprep.mubr.bf16.mxu0 0
      %320 = vmatmul.mubr.bf16.gmra.mrb[0].mxu0 %v264
      %v321 = vpop.f32.mrb[0].mxu0
      %v322 = vadd.f32 0.0, %v321
      %v323 = vpop.f32.mrb[0].mxu0
      %v324 = vpop.f32.mrb[0].mxu0
      %v325 = vadd.f32 0.0, %v324
      %v326 = vpop.f32.mrb[0].mxu0
      %327 = vmatprep.mubr.bf16.mxu0 0
      %328 = vmatmul.mubr.bf16.gmra.mrb[0].mxu0 %v267
      %v329 = vpop.f32.mrb[0].mxu0
      %v330 = vadd.f32 0.0, %v329
      %v331 = vpop.f32.mrb[0].mxu0
      %v332 = vpop.f32.mrb[0].mxu0
      %v333 = vadd.f32 0.0, %v332
      %v334 = vpop.f32.mrb[0].mxu0
      %335 = vmatprep.mubr.bf16.mxu0 0
      %336 = vmatmul.mubr.bf16.gmra.mrb[0].mxu0 %v270
      %v337 = vpop.f32.mrb[0].mxu0
      %v338 = vadd.f32 0.0, %v337
      %v339 = vpop.f32.mrb[0].mxu0
      %v340 = vpop.f32.mrb[0].mxu0
      %v341 = vadd.f32 0.0, %v340
      %v342 = vpop.f32.mrb[0].mxu0
      %343 = vmatprep.mubr.bf16.mxu0 0
      %344 = vmatmul.mubr.bf16.gmra.mrb[0].mxu0 %v273
      %v345 = vpop.f32.mrb[0].mxu0
      %v346 = vadd.f32 0.0, %v345
      %v347 = vpop.f32.mrb[0].mxu0
      %v348 = vpop.f32.mrb[0].mxu0
      %v349 = vadd.f32 0.0, %v348
      %v350 = vpop.f32.mrb[0].mxu0
      %351 = vmatprep.mubr.bf16.mxu0 0
      %352 = vmatmul.mubr.bf16.gmra.mrb[0].mxu0 %v276
      %v353 = vpop.f32.mrb[0].mxu0
      %v354 = vadd.f32 0.0, %v353
      %v355 = vpop.f32.mrb[0].mxu0
      %v356 = vpop.f32.mrb[0].mxu0
      %v357 = vadd.f32 0.0, %v356
      %v358 = vpop.f32.mrb[0].mxu0
      %359 = vmatprep.mubr.bf16.mxu0 0
      %360 = vmatmul.mubr.bf16.gmra.mrb[0].mxu0 %v279
      %v361 = vpop.f32.mrb[0].mxu0
      %v362 = vadd.f32 0.0, %v361
      %v363 = vpop.f32.mrb[0].mxu0
      %v364 = vpop.f32.mrb[0].mxu0
      %v365 = vadd.f32 0.0, %v364
      %v366 = vpop.f32.mrb[0].mxu0
      %367 = vmatprep.mubr.bf16.mxu0 0
      %368 = vmatmul.mubr.bf16.gmra.mrb[0].mxu0 %v282
      %v369 = vpop.f32.mrb[0].mxu0
      %v370 = vadd.f32 0.0, %v369
      %v371 = vpop.f32.mrb[0].mxu0
      %v372 = vpop.f32.mrb[0].mxu0
      %v373 = vadd.f32 0.0, %v372
      %v374 = vpop.f32.mrb[0].mxu0
      %375 = vmatprep.mubr.bf16.mxu0 0
      %376 = vmatmul.mubr.bf16.gmra.mrb[0].mxu0 %v285
      %v377 = vpop.f32.mrb[0].mxu0
      %v378 = vadd.f32 0.0, %v377
      %v379 = vpop.f32.mrb[0].mxu0
      %v380 = vpop.f32.mrb[0].mxu0
      %v381 = vadd.f32 0.0, %v380
      %v382 = vpop.f32.mrb[0].mxu0
      %383 = vdwg.mxu0
      %v384 = vpack.c.bf16 %v325, %v322
      %v385 = vpack.c.bf16 %v333, %v330
      %v386 = vpack.c.bf16 %v341, %v338
      %v387 = vpack.c.bf16 %v349, %v346
      %v388 = vpack.c.bf16 %v357, %v354
      %v389 = vpack.c.bf16 %v365, %v362
      %v390 = vpack.c.bf16 %v373, %v370
      %v391 = vpack.c.bf16 %v381, %v378
      %vm392 = vcmask 64512
      %393 = vst.msk [vmem:[#allocation2] sm:$0xff] %vm392, %v384
      %395 = vrot.lane.b32.xlu0 %v385, 8
      %v396 = vpop.permute.xlu0 %395
      %vm398 = vcmask 130112
      %399 = vst.msk [vmem:[#allocation2] sm:$0xff] %vm398, %v396
      %401 = vrot.lane.b32.xlu0 %v386, 16
      %v402 = vpop.permute.xlu0 %401
      %vm404 = vcmask 195712
      %405 = vst.msk [vmem:[#allocation2] sm:$0xff] %vm404, %v402
      %407 = vrot.lane.b32.xlu0 %v387, 24
      %v408 = vpop.permute.xlu0 %407
      %vm410 = vcmask 261312
      %411 = vst.msk [vmem:[#allocation2] sm:$0xff] %vm410, %v408
      %413 = vrot.lane.b32.xlu0 %v388, 32
      %v414 = vpop.permute.xlu0 %413
      %vm416 = vcmask 326912
      %417 = vst.msk [vmem:[#allocation2] sm:$0xff] %vm416, %v414
      %419 = vrot.lane.b32.xlu0 %v389, 40
      %v420 = vpop.permute.xlu0 %419
      %vm422 = vcmask 392512
      %423 = vst.msk [vmem:[#allocation2] sm:$0xff] %vm422, %v420
      %425 = vrot.lane.b32.xlu0 %v390, 48
      %v426 = vpop.permute.xlu0 %425
      %vm428 = vcmask 458112
      %429 = vst.msk [vmem:[#allocation2] sm:$0xff] %vm428, %v426
      %431 = vrot.lane.b32.xlu0 %v391, 56
      %v432 = vpop.permute.xlu0 %431
      %vm434 = vcmask 523712
      %435 = vst.msk [vmem:[#allocation2] sm:$0xff] %vm434, %v432
      %v436 = vld [vmem:[#allocation2] sm:$0xff]
      %v438 = vsel %vm262, %v229, 0
      %440 = vmatprep.subr.bf16.mxu0 0
      %441 = vmatpush1.bf16.msra.mxu0 %v436
      %442 = vmatprep.subr.bf16.mxu0 0
      %443 = vmatpush1.bf16.msra.mxu0 0
      %444 = vmatprep.subr.bf16.mxu0 0
      %445 = vmatpush1.bf16.msra.mxu0 0
      %446 = vmatprep.subr.bf16.mxu0 0
      %447 = vmatpush1.bf16.msra.mxu0 0
      %448 = vmatprep.subr.bf16.mxu0 0
      %449 = vmatpush1.bf16.msra.mxu0 0
      %450 = vmatprep.subr.bf16.mxu0 0
      %451 = vmatpush1.bf16.msra.mxu0 0
      %452 = vmatprep.subr.bf16.mxu0 0
      %453 = vmatpush1.bf16.msra.mxu0 0
      %454 = vmatprep.subr.bf16.mxu0 0
      %455 = vmatpush1.bf16.msra.mxu0 0
      %456 = vmatprep.subr.bf16.mxu0 0
      %457 = vmatpush1.bf16.msra.mxu0 0
      %458 = vmatprep.subr.bf16.mxu0 0
      %459 = vmatpush1.bf16.msra.mxu0 0
      %460 = vmatprep.subr.bf16.mxu0 0
      %461 = vmatpush1.bf16.msra.mxu0 0
      %462 = vmatprep.subr.bf16.mxu0 0
      %463 = vmatpush1.bf16.msra.mxu0 0
      %464 = vmatprep.subr.bf16.mxu0 0
      %465 = vmatpush1.bf16.msra.mxu0 0
      %466 = vmatprep.subr.bf16.mxu0 0
      %467 = vmatpush1.bf16.msra.mxu0 0
      %468 = vmatprep.subr.bf16.mxu0 0
      %469 = vmatpush1.bf16.msra.mxu0 0
      %470 = vmatprep.subr.bf16.mxu0 0
      %471 = vmatpush1.bf16.msra.mxu0 0
      %472 = vmatprep.mubr.bf16.mxu0 0
      %473 = vmatmul.mubr.bf16.gmra.mrb[0].mxu0 %v438
      %v474 = vpop.f32.mrb[0].mxu0
      %v475 = vadd.f32 0.0, %v474
      %v476 = vpop.f32.mrb[0].mxu0
      %v477 = vpop.f32.mrb[0].mxu0
      %v478 = vpop.f32.mrb[0].mxu0
      %479 = vdwg.mxu0
      %vm480 = vcmask 523264
      %481 = vst.msk [vmem:[%s227] sm:$0xff] %vm480, %v475
      %p482 = scmp.lt.s32.totalorder %s19, 4
      %s483 = scalar_select %p482, %s19, 4
      %p484 = scmp.lt.s32.totalorder %s18, 0
      %s485 = scalar_select %p484, %s18, 0
      %s486 = sadd.s32 %s485, %s483
      %s487 = smul.addr %s486, 8
      %s488 = scalar_lea.vmem %s3, %s487
      // Predicated region
      $region33: #{multi_random_crop.1} parent=31 // pred_check
        %p489 = pneg %p124
      $region34: #{multi_random_crop.1} parent=31 // pred_check_branch
        %491 = sbr.rel (%p489) target = $region36
      $region35: #{multi_random_crop.1} parent=31 // pred_region
        _
      $region36: #{multi_random_crop.1} parent=31 // pred_fallthru
        _
    $region32: #{multi_random_crop.1} parent=5 // pred_fallthru
      _
    %p492 = scmp.le.s32.totalorder 2, %s9
    // Predicated region
    $region37: #{multi_random_crop.1} parent=5 // pred_check
      %p493 = pneg %p492
    $region38: #{multi_random_crop.1} parent=5 // pred_check_branch
      %495 = sbr.rel (%p493) target = $region40
    $region39: #{multi_random_crop.1} parent=5 // pred_region
      %s496 = ssub.s32 %s9, 2
      // Predicated region
      $region41: #{multi_random_crop.1} parent=39 // pred_check
        %p497 = pneg %p130
      $region42: #{multi_random_crop.1} parent=39 // pred_check_branch
        %499 = sbr.rel (%p497) target = $region44
      $region43: #{multi_random_crop.1} parent=39 // pred_region
        %p500 = scmp.lt.s32.totalorder %s21, 4
        %s501 = scalar_select %p500, %s21, 4
        %p502 = scmp.lt.s32.totalorder %s20, 0
        %s503 = scalar_select %p502, %s20, 0
        %s504 = sadd.s32 %s503, %s501
        %s505 = smul.addr %s504, 8
        %s506 = scalar_lea.vmem %s3, %s505
      $region44: #{multi_random_crop.1} parent=39 // pred_fallthru
        _
    $region40: #{multi_random_crop.1} parent=5 // pred_fallthru
      _
  $region6: #{multi_random_crop.1} parent=0 // loop_footer
    %s13 = sadd.s32 1, %s9
  $region7: #{multi_random_crop.1} parent=0 // loop_footer_branch
    %8 = sbr.rel target = $region3
  $region8: #{multi_random_crop.1} parent=0 // loop_exit
    _

</llo_original>
